<compile_context>
chip_gen: v5e
topology: v5e:2x2
jax: 0.10.0
libtpu: 0.0.40
codegen_flags: <defaults>
</compile_context>

<pallas_src>
import functools
import math

import jax
import jax.numpy as jnp
from jax import lax
from jax.experimental import pallas as pl
from jax.experimental.pallas import tpu as pltpu

_LANES = 128


def _round_up(x, m):
    return (x + m - 1) // m * m


# --------------------------------------------------------------------------
# Per-G-tile spike & slab decoder: beta tile, partial KL, aa tile
# --------------------------------------------------------------------------
def _decoder_tile_kernel(
    theta_ref,        # (B, K)        resident across grid (f32)
    spike_logit_ref,  # (K, TG)       native dtype
    slab_mean_ref,    # (K, TG)
    slab_lnvar_ref,   # (K, TG)
    bias_d_ref,       # (1, TG)
    eps_ref,          # (K, TG)
    beta_ref,         # (K, TG)       out (f32)
    kl_ref,           # (1, 8, 128)   out (per-tile partial KL, broadcast scalar)
    aa_ref,           # (B, TG)       out (f32)
    *,
    logit_0: float,
    lnvar_0: float,
    inv_var_0: float,    # exp(-lnvar_0), precomputed on host
    n_genes: int,        # true (unpadded) G, for masking OOB columns of last tile
    block_g: int,
    ragged: bool,        # static: G % block_g != 0
):
    f32 = jnp.float32
    spike_logit = spike_logit_ref[...].astype(f32)
    slab_mean = slab_mean_ref[...].astype(f32)
    slab_lnvar = slab_lnvar_ref[...].astype(f32)

    # pip = sigmoid(spike_logit): one EUP exp + exact reciprocal (approx recip
    # would leak ~2^-12 relative error into beta — see correctness review).
    pip = 1.0 / (1.0 + jnp.exp(-spike_logit))
    slab_var = jnp.exp(slab_lnvar)           # computed once, reused below

    # ---- get_beta: spike & slab reparameterized sample ----
    mean = slab_mean * pip
    var = pip * (1.0 - pip) * jnp.square(slab_mean) + pip * slab_var
    var = jnp.maximum(var, 0.0)               # guard f32 round-off before sqrt
    beta = (mean + eps_ref[...].astype(f32) * jnp.sqrt(var)
            - bias_d_ref[...].astype(f32))
    beta_ref[...] = beta

    # ---- safe_exp(beta) ----
    exp_beta = jnp.exp(jnp.clip(beta, -10.0, 10.0))

    # ---- sparse_kl_loss (per-tile partial sum) ----
    # softplus(x) == max(x, 0) - log(max(pip, 1 - pip))  (exact, overflow-safe,
    # reuses pip). The constant "+ softplus(logit_0)" term is hoisted to the
    # wrapper (added once as K*G*softplus(logit_0)).
    sp_spike = jnp.maximum(spike_logit, 0.0) - jnp.log(jnp.maximum(pip, 1.0 - pip))
    sq_term = inv_var_0 * (jnp.square(slab_mean) + slab_var)
    kl_g = -0.5 * (1.0 + slab_lnvar - lnvar_0 - sq_term)
    kl_tile = pip * ((spike_logit - logit_0) + kl_g) - sp_spike

    if ragged:
        # Only the last tile can contain out-of-range (garbage) columns.
        j = pl.program_id(0)
        is_last = j == pl.num_programs(0) - 1

        @pl.when(jnp.logical_not(is_last))
        def _():
            kl_ref[...] = jnp.broadcast_to(jnp.sum(kl_tile), kl_ref.shape)

        @pl.when(is_last)
        def _():
            col = j * block_g + lax.broadcasted_iota(jnp.int32, kl_tile.shape, 1)
            masked = jnp.where(col < n_genes, kl_tile, 0.0)
            kl_ref[...] = jnp.broadcast_to(jnp.sum(masked), kl_ref.shape)
    else:
        kl_ref[...] = jnp.broadcast_to(jnp.sum(kl_tile), kl_ref.shape)

    # ---- aa tile = theta @ safe_exp(beta)   (MXU) ----
    aa_ref[...] = jnp.dot(theta_ref[...], exp_beta,
                          preferred_element_type=jnp.float32)


# --------------------------------------------------------------------------
# Wrapper
# --------------------------------------------------------------------------
def spike_slab_decoder_forward(z, spike_logit, slab_mean, slab_lnvar, bias_d, eps,
                               *, logit_0: float, lnvar_0: float, block_g=None):
    f32 = jnp.float32
    B, K = z.shape
    Kp, G = slab_mean.shape
    assert K == Kp
    assert spike_logit.shape == (K, G) and slab_lnvar.shape == (K, G)
    assert eps.shape == (K, G) and bias_d.shape == (1, G)

    # theta = softmax(z): (B, K) is a single vreg of work; computing it here
    # avoids a second pallas_call + serialization. (Only the tiny z is cast.)
    theta = jax.nn.softmax(z.astype(f32), axis=-1)

    # ---- G tile size: lane-dense, sized against a ~16 MiB double-buffer budget
    if block_g is None:
        # f32-upper-bound bytes per gene column, x2 for double buffering:
        # 4 (K)-tall input streams + beta out (K) + bias (1) + aa out (B).
        per_lane_bytes = 2 * (5 * K + B + 1) * 4
        budget = 16 * 1024 * 1024
        block_g = max(_LANES,
                      min(8192, (budget // per_lane_bytes) // _LANES * _LANES))
    block_g = min(block_g, _round_up(G, _LANES))
    assert block_g % _LANES == 0

    num_tiles = pl.cdiv(G, block_g)
    ragged = (G % block_g) != 0

    # Host-side constants (no per-element transcendentals for them in-kernel).
    sp_logit_0 = max(logit_0, 0.0) + math.log1p(math.exp(-abs(logit_0)))
    inv_var_0 = math.exp(-lnvar_0)

    kernel = functools.partial(
        _decoder_tile_kernel,
        logit_0=float(logit_0), lnvar_0=float(lnvar_0),
        inv_var_0=float(inv_var_0),
        n_genes=G, block_g=block_g, ragged=ragged,
    )

    # VMEM budget: double-buffered per-step blocks (native input dtypes) +
    # resident theta, with margin; clamped under the device VMEM capacity.
    isz = lambda a: jnp.dtype(a.dtype).itemsize
    in_bytes = block_g * (K * (isz(spike_logit) + isz(slab_mean)
                               + isz(slab_lnvar) + isz(eps)) + isz(bias_d))
    out_bytes = 4 * (K * block_g + B * block_g + 8 * _LANES)
    bytes_per_step = 2 * (in_bytes + out_bytes) + 4 * B * K
    try:
        info = pltpu.get_tpu_info()
        vmem_cap = int(getattr(info, "vmem_capacity_bytes", 64 * 1024 * 1024))
    except Exception:
        vmem_cap = 64 * 1024 * 1024  # v7x per-TC capacity (most restrictive)
    vmem_limit = int(min(max(vmem_cap - 16 * 1024 * 1024, 32 * 1024 * 1024),
                         max(32 * 1024 * 1024, 2 * bytes_per_step)))

    # TODO(synk): optionally generate eps in-kernel (pltpu.prng_seed +
    # pltpu.stateful_normal) to drop one (K, G) HBM input stream; kept as an
    # explicit input here for RNG determinism vs. the PyTorch reference.
    beta, kl_parts, aa = pl.pallas_call(
        kernel,
        out_shape=(
            jax.ShapeDtypeStruct((K, G), f32),                   # beta
            jax.ShapeDtypeStruct((num_tiles, 8, _LANES), f32),   # per-tile KL
            jax.ShapeDtypeStruct((B, G), f32),                   # aa
        ),
        grid_spec=pltpu.PrefetchScalarGridSpec(
            num_scalar_prefetch=0,
            grid=(num_tiles,),
            in_specs=[
                pl.BlockSpec((B, K), lambda j: (0, 0)),            # theta (resident)
                pl.BlockSpec((K, block_g), lambda j: (0, j)),      # spike_logit
                pl.BlockSpec((K, block_g), lambda j: (0, j)),      # slab_mean
                pl.BlockSpec((K, block_g), lambda j: (0, j)),      # slab_lnvar
                pl.BlockSpec((1, block_g), lambda j: (0, j)),      # bias_d
                pl.BlockSpec((K, block_g), lambda j: (0, j)),      # eps
            ],
            out_specs=(
                pl.BlockSpec((K, block_g), lambda j: (0, j)),       # beta
                pl.BlockSpec((1, 8, _LANES), lambda j: (j, 0, 0)),  # kl partials
                pl.BlockSpec((B, block_g), lambda j: (0, j)),       # aa
            ),
        ),
        compiler_params=pltpu.CompilerParams(
            dimension_semantics=("parallel",),
            vmem_limit_bytes=vmem_limit,
        ),
    )(theta, spike_logit, slab_mean, slab_lnvar, bias_d, eps)

    # softplus(logit_0) was hoisted out of the per-element KL; add it once here
    # (valid elements only — OOB columns were masked to exactly zero in-kernel).
    beta_kl = jnp.sum(kl_parts[:, 0, 0]) + jnp.float32(K * G * sp_logit_0)
    return beta, beta_kl, theta, aa


# --------------------------------------------------------------------------
# Pure-JAX reference (mirrors the PyTorch module)
# --------------------------------------------------------------------------
def reference_forward(z, spike_logit, slab_mean, slab_lnvar, bias_d, eps,
                      *, logit_0, lnvar_0):
    pip = jax.nn.sigmoid(spike_logit)
    mean = slab_mean * pip
    var = pip * (1.0 - pip) * jnp.square(slab_mean) + pip * jnp.exp(slab_lnvar)
    beta = mean + eps * jnp.sqrt(var) - bias_d
    exp_beta = jnp.exp(jnp.clip(beta, -10.0, 10.0))
    theta = jax.nn.softmax(z, axis=-1)
    aa = theta @ exp_beta
    kl_pip = (pip * (spike_logit - logit_0)
              - jax.nn.softplus(spike_logit) + jax.nn.softplus(jnp.float32(logit_0)))
    sq_term = jnp.exp(-lnvar_0) * (jnp.square(slab_mean) + jnp.exp(slab_lnvar))
    kl_g = -0.5 * (1.0 + slab_lnvar - lnvar_0 - sq_term)
    kl = jnp.sum(kl_pip + pip * kl_g)
    return beta, kl, theta, aa


if __name__ == "__main__":
    # Small shapes consistent with the module; G deliberately NOT a multiple of
    # 128 so the ragged-last-block (no-pad) path + KL mask are exercised.
    batch, n_input, n_output = 8, 16, 200
    pip0, v0 = 0.1, 1.0

    key = jax.random.PRNGKey(0)
    k_mean, k_z, k_eps, k_logit = jax.random.split(key, 4)

    lnvar_0 = float(math.log(v0))
    logit_0 = float(math.log(pip0 / (1.0 - pip0)))
    bias_d = jnp.zeros((1, n_output), jnp.float32)
    slab_mean = jax.random.normal(k_mean, (n_input, n_output), jnp.float32) * math.sqrt(v0)
    slab_lnvar = jnp.full((n_input, n_output), math.log(v0), jnp.float32)
    spike_logit = 0.5 * jax.random.normal(k_logit, (n_input, n_output), jnp.float32)

    z = jax.random.normal(k_z, (batch, n_input), jnp.float32)
    # TODO(synk): torch.randn_like noise is drawn here and passed in as an
    # explicit input so the reparameterized sample is deterministic.
    eps = jax.random.normal(k_eps, (n_input, n_output), jnp.float32)

    beta_r, kl_r, theta_r, aa_r = reference_forward(
        z, spike_logit, slab_mean, slab_lnvar, bias_d, eps,
        logit_0=logit_0, lnvar_0=lnvar_0,
    )

    # Run once with a forced small tile (2-step grid, ragged last tile) and
    # once with the auto-selected tile (single ragged tile covering G).
    for bg in (128, None):
        beta, beta_kl, theta, aa = spike_slab_decoder_forward(
            z, spike_logit, slab_mean, slab_lnvar, bias_d, eps,
            logit_0=logit_0, lnvar_0=lnvar_0, block_g=bg,
        )
        jax.block_until_ready((beta, beta_kl, theta, aa))

        assert jnp.allclose(beta, beta_r, rtol=1e-5, atol=1e-5)
        assert jnp.allclose(theta, theta_r, rtol=1e-5, atol=1e-5)
        assert jnp.allclose(aa, aa_r, rtol=1e-4, atol=1e-4)
        assert jnp.allclose(beta_kl, kl_r, rtol=1e-4, atol=1e-3)

    print("KERNEL_OK")
</pallas_src>

<mosaic_0001>
module attributes {stable_mosaic.version = 11 : i64} {
  func.func @_decoder_tile_kernel(%arg0: i32, %arg1: memref<8x16xf32, #tpu.memory_space<vmem>>, %arg2: memref<16x128xf32, #tpu.memory_space<vmem>>, %arg3: memref<16x128xf32, #tpu.memory_space<vmem>>, %arg4: memref<16x128xf32, #tpu.memory_space<vmem>>, %arg5: memref<1x128xf32, #tpu.memory_space<vmem>>, %arg6: memref<16x128xf32, #tpu.memory_space<vmem>>, %arg7: memref<16x128xf32, #tpu.memory_space<vmem>>, %arg8: memref<1x8x128xf32, #tpu.memory_space<vmem>>, %arg9: memref<8x128xf32, #tpu.memory_space<vmem>>) attributes {dimension_semantics = [#tpu.dimension_semantics<parallel>], iteration_bounds = array<i64: 2>, scalar_prefetch = 0 : i64, scratch_operands = 0 : i64, tpu.core_type = #tpu.core_type<tc>, window_params = [{pipeline_mode = #tpu.pipeline_mode<synchronous>, transform_indices = @transform_0, window_bounds = array<i64: 8, 16>}, {transform_indices = @transform_1, window_bounds = array<i64: 16, 128>}, {transform_indices = @transform_2, window_bounds = array<i64: 16, 128>}, {transform_indices = @transform_3, window_bounds = array<i64: 16, 128>}, {transform_indices = @transform_4, window_bounds = array<i64: 1, 128>}, {transform_indices = @transform_5, window_bounds = array<i64: 16, 128>}, {transform_indices = @transform_6, window_bounds = array<i64: 16, 128>}, {transform_indices = @transform_7, window_bounds = array<i64: 1, 8, 128>}, {transform_indices = @transform_8, window_bounds = array<i64: 8, 128>}]} {
    %c0 = arith.constant 0 : index
    %c0_0 = arith.constant 0 : index
    %0 = vector.load %arg2[%c0, %c0_0] : memref<16x128xf32, #tpu.memory_space<vmem>>, vector<16x128xf32>
    %c0_1 = arith.constant 0 : index
    %c0_2 = arith.constant 0 : index
    %1 = vector.load %arg3[%c0_1, %c0_2] : memref<16x128xf32, #tpu.memory_space<vmem>>, vector<16x128xf32>
    %c0_3 = arith.constant 0 : index
    %c0_4 = arith.constant 0 : index
    %2 = vector.load %arg4[%c0_3, %c0_4] : memref<16x128xf32, #tpu.memory_space<vmem>>, vector<16x128xf32>
    %cst = arith.constant 0.000000e+00 : f32
    %3 = vector.broadcast %cst : f32 to vector<16x128xf32>
    %4 = arith.subf %3, %0 : vector<16x128xf32>
    %5 = math.exp %4 : vector<16x128xf32>
    %cst_5 = arith.constant 1.000000e+00 : f32
    %6 = vector.broadcast %cst_5 : f32 to vector<16x128xf32>
    %7 = arith.addf %6, %5 : vector<16x128xf32>
    %cst_6 = arith.constant 1.000000e+00 : f32
    %8 = vector.broadcast %cst_6 : f32 to vector<16x128xf32>
    %9 = arith.divf %8, %7 : vector<16x128xf32>
    %10 = math.exp %2 : vector<16x128xf32>
    %11 = arith.mulf %1, %9 : vector<16x128xf32>
    %cst_7 = arith.constant 1.000000e+00 : f32
    %12 = vector.broadcast %cst_7 : f32 to vector<16x128xf32>
    %13 = arith.subf %12, %9 : vector<16x128xf32>
    %14 = arith.mulf %9, %13 : vector<16x128xf32>
    %15 = arith.mulf %1, %1 : vector<16x128xf32>
    %16 = arith.mulf %14, %15 : vector<16x128xf32>
    %17 = arith.mulf %9, %10 : vector<16x128xf32>
    %18 = arith.addf %16, %17 : vector<16x128xf32>
    %cst_8 = arith.constant 0.000000e+00 : f32
    %19 = vector.broadcast %cst_8 : f32 to vector<16x128xf32>
    %20 = arith.maximumf %18, %19 : vector<16x128xf32>
    %c0_9 = arith.constant 0 : index
    %c0_10 = arith.constant 0 : index
    %21 = vector.load %arg6[%c0_9, %c0_10] : memref<16x128xf32, #tpu.memory_space<vmem>>, vector<16x128xf32>
    %22 = math.sqrt %20 : vector<16x128xf32>
    %23 = arith.mulf %21, %22 : vector<16x128xf32>
    %24 = arith.addf %11, %23 : vector<16x128xf32>
    %c0_11 = arith.constant 0 : index
    %c0_12 = arith.constant 0 : index
    %25 = vector.load %arg5[%c0_11, %c0_12] : memref<1x128xf32, #tpu.memory_space<vmem>>, vector<1x128xf32>
    %26 = vector.broadcast %25 : vector<1x128xf32> to vector<16x128xf32>
    %27 = arith.subf %24, %26 : vector<16x128xf32>
    %c0_13 = arith.constant 0 : index
    %c0_14 = arith.constant 0 : index
    %28 = vector.load %arg7[%c0_13, %c0_14] : memref<16x128xf32, #tpu.memory_space<vmem>>, vector<16x128xf32>
    tpu.vector_store %arg7[%c0_13, %c0_14], %27 {strides = array<i32>} : memref<16x128xf32, #tpu.memory_space<vmem>>, vector<16x128xf32>,
    %cst_15 = arith.constant -1.000000e+01 : f32
    %cst_16 = arith.constant 1.000000e+01 : f32
    %29 = vector.broadcast %cst_15 : f32 to vector<16x128xf32>
    %30 = arith.maximumf %29, %27 : vector<16x128xf32>
    %31 = vector.broadcast %cst_16 : f32 to vector<16x128xf32>
    %32 = arith.minimumf %31, %30 : vector<16x128xf32>
    %33 = math.exp %32 : vector<16x128xf32>
    %cst_17 = arith.constant 0.000000e+00 : f32
    %34 = vector.broadcast %cst_17 : f32 to vector<16x128xf32>
    %35 = arith.maximumf %0, %34 : vector<16x128xf32>
    %cst_18 = arith.constant 1.000000e+00 : f32
    %36 = vector.broadcast %cst_18 : f32 to vector<16x128xf32>
    %37 = arith.subf %36, %9 : vector<16x128xf32>
    %38 = arith.maximumf %9, %37 : vector<16x128xf32>
    %39 = math.log %38 : vector<16x128xf32>
    %40 = arith.subf %35, %39 : vector<16x128xf32>
    %41 = arith.mulf %1, %1 : vector<16x128xf32>
    %42 = arith.addf %41, %10 : vector<16x128xf32>
    %cst_19 = arith.constant 1.000000e+00 : f32
    %43 = vector.broadcast %cst_19 : f32 to vector<16x128xf32>
    %44 = arith.mulf %43, %42 : vector<16x128xf32>
    %cst_20 = arith.constant 1.000000e+00 : f32
    %45 = vector.broadcast %cst_20 : f32 to vector<16x128xf32>
    %46 = arith.addf %45, %2 : vector<16x128xf32>
    %cst_21 = arith.constant 0.000000e+00 : f32
    %47 = vector.broadcast %cst_21 : f32 to vector<16x128xf32>
    %48 = arith.subf %46, %47 : vector<16x128xf32>
    %49 = arith.subf %48, %44 : vector<16x128xf32>
    %cst_22 = arith.constant -5.000000e-01 : f32
    %50 = vector.broadcast %cst_22 : f32 to vector<16x128xf32>
    %51 = arith.mulf %50, %49 : vector<16x128xf32>
    %cst_23 = arith.constant -2.19722462 : f32
    %52 = vector.broadcast %cst_23 : f32 to vector<16x128xf32>
    %53 = arith.subf %0, %52 : vector<16x128xf32>
    %54 = arith.addf %53, %51 : vector<16x128xf32>
    %55 = arith.mulf %9, %54 : vector<16x128xf32>
    %56 = arith.subf %55, %40 : vector<16x128xf32>
    %c1_i32 = arith.constant 1 : i32
    %57 = arith.cmpi eq, %arg0, %c1_i32 : i32
    %true = arith.constant true
    %58 = arith.xori %57, %true : i1
    %59 = arith.extui %58 : i1 to i32
    %c0_i32 = arith.constant 0 : i32
    %60 = arith.cmpi ne, %59, %c0_i32 : i32
    scf.if %60 {
      %66 = vector.shape_cast %56 : vector<16x128xf32> to vector<1x16x128xf32>
      %cst_30 = arith.constant dense<0.000000e+00> : vector<1xf32>
      %67 = vector.multi_reduction <add>, %66, %cst_30 [1, 2] : vector<1x16x128xf32> to vector<1xf32>
      %68 = vector.shape_cast %67 : vector<1xf32> to vector<1x1x1xf32>
      %69 = vector.extract %68[0, 0, 0] : f32 from vector<1x1x1xf32>
      %70 = vector.broadcast %69 : f32 to vector<1x8x128xf32>
      %c0_31 = arith.constant 0 : index
      %c0_32 = arith.constant 0 : index
      %c0_33 = arith.constant 0 : index
      %71 = vector.load %arg8[%c0_31, %c0_32, %c0_33] : memref<1x8x128xf32, #tpu.memory_space<vmem>>, vector<1x8x128xf32>
      tpu.vector_store %arg8[%c0_31, %c0_32, %c0_33], %70 {strides = array<i32>} : memref<1x8x128xf32, #tpu.memory_space<vmem>>, vector<1x8x128xf32>,
    } else {
    }
    %61 = arith.extui %57 : i1 to i32
    %c0_i32_24 = arith.constant 0 : i32
    %62 = arith.cmpi ne, %61, %c0_i32_24 : i32
    scf.if %62 {
      %c128_i32 = arith.constant 128 : i32
      %66 = arith.muli %arg0, %c128_i32 : i32
      %67 = tpu.iota {dimensions = array<i32: 1>} : vector<16x128xi32>
      %68 = vector.broadcast %66 : i32 to vector<16x128xi32>
      %69 = arith.addi %68, %67 : vector<16x128xi32>
      %c200_i32 = arith.constant 200 : i32
      %70 = vector.broadcast %c200_i32 : i32 to vector<16x128xi32>
      %71 = arith.cmpi slt, %69, %70 : vector<16x128xi32>
      %cst_30 = arith.constant 0.000000e+00 : f32
      %72 = vector.broadcast %cst_30 : f32 to vector<16x128xf32>
      %73 = arith.select %71, %56, %72 : vector<16x128xi1>, vector<16x128xf32>
      %74 = vector.shape_cast %73 : vector<16x128xf32> to vector<1x16x128xf32>
      %cst_31 = arith.constant dense<0.000000e+00> : vector<1xf32>
      %75 = vector.multi_reduction <add>, %74, %cst_31 [1, 2] : vector<1x16x128xf32> to vector<1xf32>
      %76 = vector.shape_cast %75 : vector<1xf32> to vector<1x1x1xf32>
      %77 = vector.extract %76[0, 0, 0] : f32 from vector<1x1x1xf32>
      %78 = vector.broadcast %77 : f32 to vector<1x8x128xf32>
      %c0_32 = arith.constant 0 : index
      %c0_33 = arith.constant 0 : index
      %c0_34 = arith.constant 0 : index
      %79 = vector.load %arg8[%c0_32, %c0_33, %c0_34] : memref<1x8x128xf32, #tpu.memory_space<vmem>>, vector<1x8x128xf32>
      tpu.vector_store %arg8[%c0_32, %c0_33, %c0_34], %78 {strides = array<i32>} : memref<1x8x128xf32, #tpu.memory_space<vmem>>, vector<1x8x128xf32>,
    } else {
    }
    %c0_25 = arith.constant 0 : index
    %c0_26 = arith.constant 0 : index
    %63 = vector.load %arg1[%c0_25, %c0_26] : memref<8x16xf32, #tpu.memory_space<vmem>>, vector<8x16xf32>
    %cst_27 = arith.constant dense<0.000000e+00> : vector<8x128xf32>
    %64 = tpu.matmul %63, %33, %cst_27 {dimension_numbers = #tpu.dot_dimension_numbers<[1], [0], [0], [1], [0, 0, 1, 1], [], []>} : vector<8x16xf32>, vector<16x128xf32>, vector<8x128xf32> -> vector<8x128xf32>
    %c0_28 = arith.constant 0 : index
    %c0_29 = arith.constant 0 : index
    %65 = vector.load %arg9[%c0_28, %c0_29] : memref<8x128xf32, #tpu.memory_space<vmem>>, vector<8x128xf32>
    tpu.vector_store %arg9[%c0_28, %c0_29], %64 {strides = array<i32>} : memref<8x128xf32, #tpu.memory_space<vmem>>, vector<8x128xf32>,
    return
  }
  func.func @transform_0(%arg0: i32) -> (i32, i32) {
    %c0_i32 = arith.constant 0 : i32
    %c0_i32_0 = arith.constant 0 : i32
    %c0_i32_1 = arith.constant 0 : i32
    return %c0_i32, %c0_i32_0 : i32, i32
  }
  func.func @transform_1(%arg0: i32) -> (i32, i32) {
    %c0_i32 = arith.constant 0 : i32
    %c0_i32_0 = arith.constant 0 : i32
    return %c0_i32, %arg0 : i32, i32
  }
  func.func @transform_2(%arg0: i32) -> (i32, i32) {
    %c0_i32 = arith.constant 0 : i32
    %c0_i32_0 = arith.constant 0 : i32
    return %c0_i32, %arg0 : i32, i32
  }
  func.func @transform_3(%arg0: i32) -> (i32, i32) {
    %c0_i32 = arith.constant 0 : i32
    %c0_i32_0 = arith.constant 0 : i32
    return %c0_i32, %arg0 : i32, i32
  }
  func.func @transform_4(%arg0: i32) -> (i32, i32) {
    %c0_i32 = arith.constant 0 : i32
    %c0_i32_0 = arith.constant 0 : i32
    return %c0_i32, %arg0 : i32, i32
  }
  func.func @transform_5(%arg0: i32) -> (i32, i32) {
    %c0_i32 = arith.constant 0 : i32
    %c0_i32_0 = arith.constant 0 : i32
    return %c0_i32, %arg0 : i32, i32
  }
  func.func @transform_6(%arg0: i32) -> (i32, i32) {
    %c0_i32 = arith.constant 0 : i32
    %c0_i32_0 = arith.constant 0 : i32
    return %c0_i32, %arg0 : i32, i32
  }
  func.func @transform_7(%arg0: i32) -> (i32, i32, i32) {
    %c0_i32 = arith.constant 0 : i32
    %c0_i32_0 = arith.constant 0 : i32
    %c0_i32_1 = arith.constant 0 : i32
    return %arg0, %c0_i32, %c0_i32_0 : i32, i32, i32
  }
  func.func @transform_8(%arg0: i32) -> (i32, i32) {
    %c0_i32 = arith.constant 0 : i32
    %c0_i32_0 = arith.constant 0 : i32
    return %c0_i32, %arg0 : i32, i32
  }
}

</mosaic_0001>

<llo_original>
// kernel: tpu_custom_call.1
$region0: #{tpu_custom_call.1}
  #allocation0 [shape = 'u32[]', space=smem, size = 0x4, offset = 0x4, fixed_abs, tag = 'smem constant byte address 0x4 - core index']
  #allocation1 [shape = 'u32[72,128]{1,0:T(1,128)}', space=vmem, size = 0x9000, scoped, tag = 'internal scratch']
  %s0 = inlined_call_operand.hbm [shape: f32[8,16], index: 0, kind: input, shape index: {}]
  %s1 = inlined_call_operand.hbm [shape: f32[16,200], index: 1, kind: input, shape index: {}]
  %s2 = inlined_call_operand.hbm [shape: f32[16,200], index: 2, kind: input, shape index: {}]
  %s3 = inlined_call_operand.hbm [shape: f32[16,200], index: 3, kind: input, shape index: {}]
  %s4 = inlined_call_operand.vmem [shape: f32[1,200], index: 4, kind: input, shape index: {}]
  %s5 = inlined_call_operand.hbm [shape: f32[16,200], index: 5, kind: input, shape index: {}]
  %s6 = inlined_call_operand.hbm [shape: f32[16,200], index: 6, kind: output, shape index: {0}]
  %s7 = inlined_call_operand.hbm [shape: f32[2,8,128], index: 7, kind: output, shape index: {1}]
  %s8 = inlined_call_operand.hbm [shape: f32[8,200], index: 8, kind: output, shape index: {2}]
  %9 = xla_tuple %s6, %s7, %s8
  %s10 = sld [smem:[#allocation0]]
  $region101: #{tpu_custom_call.1} parent=0
    _
  %s12 = ssub.s32 1, %s10
  %s13 = scalar_select 0, %s12, %s10
  $region1: #{tpu_custom_call.1} parent=0
    #allocation2 [shape = 'u8[4096]{0}', space=vmem, size = 0x1000, scoped, tag = 'input window, operand 0, single buffered']
    #allocation3 [shape = 's32[2]{0}', space=sflag, size = 0x8, scoped, tag = 'scoped memory for tpu_custom_call.1']
    #allocation4 [shape = 's32[2]{0}', space=sflag, size = 0x8, scoped, tag = 'scoped memory for tpu_custom_call.1']
    #allocation5 [shape = 'u8[16384]{0}', space=vmem, size = 0x4000, scoped, tag = 'input window, operand 1']
    #allocation6 [shape = 's32[2]{0}', space=sflag, size = 0x8, scoped, tag = 'scoped memory for tpu_custom_call.1']
    #allocation7 [shape = 'u8[16384]{0}', space=vmem, size = 0x4000, scoped, tag = 'input window, operand 2']
    #allocation8 [shape = 'u8[16384]{0}', space=vmem, size = 0x4000, scoped, tag = 'input window, operand 3']
    #allocation9 [shape = 's32[2]{0}', space=sflag, size = 0x8, scoped, tag = 'scoped memory for tpu_custom_call.1']
    #allocation10 [shape = 'u8[16384]{0}', space=vmem, size = 0x4000, scoped, tag = 'input window, operand 5']
    #allocation11 [shape = 'u8[16384]{0}', space=vmem, size = 0x4000, scoped, tag = 'output window, operand 0']
    #allocation12 [shape = 'u8[8192]{0}', space=vmem, size = 0x2000, scoped, tag = 'output window, operand 1']
    #allocation13 [shape = 's32[2]{0}', space=sflag, size = 0x8, scoped, tag = 'scoped memory for tpu_custom_call.1']
    #allocation14 [shape = 'u8[8192]{0}', space=vmem, size = 0x2000, scoped, tag = 'output window, operand 2']
    %14 = vsyncpa [#allocation3], 0
    %15 = vsyncpa [#allocation6], 0
    %s16 = scalar_lea.sflag [#allocation6], 1
    %17 = vsyncpa %s16, 0
    %18 = vsyncpa [#allocation9], 0
    %s19 = scalar_lea.sflag [#allocation9], 1
    %20 = vsyncpa %s19, 0
    %21 = vsyncpa [#allocation4], 0
    %s22 = scalar_lea.sflag [#allocation4], 1
    %23 = vsyncpa %s22, 0
    %24 = vsyncpa [#allocation13], 0
    %s25 = scalar_lea.sflag [#allocation13], 1
    %26 = vsyncpa %s25, 0
    loop: start=0, step=1, limit=4
    $region2: #{tpu_custom_call.1} parent=1 // loop_pre_header
      _
    $region3: #{tpu_custom_call.1} parent=1 // loop_header
      %s28 = sphi 0, %s32
      %p29 = scmp.ge.s32.totalorder %s28, 4
      %s36 = sphi 0, %s36
      %s38 = sphi 0, %s36
      %s39 = sphi 0, %s38
      %s53 = sphi 0, %s39
      %s59 = sphi 0, %s61
      %s62 = sphi 0, %s59
      %s63 = sphi 0, %s62
      %s79 = sphi 0, %s63
      %s85 = sphi 0, %s87
      %s88 = sphi 0, %s85
      %s89 = sphi 0, %s88
      %s105 = sphi 0, %s89
      %s111 = sphi 0, %s113
      %s114 = sphi 0, %s111
      %s115 = sphi 0, %s114
      %s131 = sphi 0, %s115
      %s137 = sphi 0, %s139
      %s140 = sphi 0, %s137
      %s141 = sphi 0, %s140
      %s157 = sphi 0, %s141
      %s163 = sphi 0, %s165
      %s166 = sphi 0, %s163
      %s167 = sphi 0, %s166
      %s183 = sphi 0, %s167
      %s189 = sphi 0, %s191
      %s192 = sphi 0, %s189
      %s193 = sphi 0, %s192
      %s209 = sphi 0, %s193
      %s215 = sphi 0, %s217
      %s218 = sphi 0, %s215
      %s219 = sphi 0, %s218
      %s235 = sphi 0, %s219
      %s241 = sphi 0, %s243
      %s244 = sphi 0, %s241
      %s245 = sphi 0, %s244
      %s261 = sphi 0, %s245
    $region4: #{tpu_custom_call.1} parent=1 // loop_header_branch
      %31 = sbr.rel (%p29) target = $region8
    $region5: #{tpu_custom_call.1} parent=1 // loop_body
      %s33 = ssub.s32 %s28, 1
      %s34 = ssub.s32 %s28, 2
      %s35 = sadd.s32 %s28, 1
      %s37 = sadd.s32 %s36, 1
      %p40 = scmp.eq.s32.totalorder %s28, 1
      %p41 = scmp.ne.s32.totalorder %s36, %s38
      %p42 = scmp.eq.s32.totalorder %s28, 0
      %p43 = por %p41, %p42
      %p44 = scmp.ne.s32.totalorder %s36, %s38
      %p45 = scmp.eq.s32.totalorder %s33, 1
      %p46 = por %p44, %p45
      %p47 = scmp.ne.s32.totalorder %s38, %s39
      %p48 = scmp.eq.s32.totalorder %s33, 0
      %p49 = por %p47, %p48
      %p50 = scmp.ne.s32.totalorder %s38, %s39
      %p51 = scmp.eq.s32.totalorder %s34, 1
      %p52 = por %p50, %p51
      %p54 = scmp.ne.s32.totalorder %s39, %s53
      %p55 = scmp.eq.s32.totalorder %s34, 0
      %p56 = por %p54, %p55
      %s57 = ssub.s32 %s28, %s35
      %p58 = scmp.eq.s32.totalorder %s57, 0
      %s60 = sadd.s32 %s59, 1
      %s61 = scalar_select %p58, %s59, %s60
      %p64 = pneg %p58
      %p65 = scmp.eq.s32.totalorder %s28, 1
      %p66 = por %p64, %p65
      %p67 = scmp.ne.s32.totalorder %s59, %s62
      %p68 = scmp.eq.s32.totalorder %s28, 0
      %p69 = por %p67, %p68
      %p70 = scmp.ne.s32.totalorder %s59, %s62
      %p71 = scmp.eq.s32.totalorder %s33, 1
      %p72 = por %p70, %p71
      %p73 = scmp.ne.s32.totalorder %s62, %s63
      %p74 = scmp.eq.s32.totalorder %s33, 0
      %p75 = por %p73, %p74
      %p76 = scmp.ne.s32.totalorder %s62, %s63
      %p77 = scmp.eq.s32.totalorder %s34, 1
      %p78 = por %p76, %p77
      %p80 = scmp.ne.s32.totalorder %s63, %s79
      %p81 = scmp.eq.s32.totalorder %s34, 0
      %p82 = por %p80, %p81
      %s83 = ssub.s32 %s28, %s35
      %p84 = scmp.eq.s32.totalorder %s83, 0
      %s86 = sadd.s32 %s85, 1
      %s87 = scalar_select %p84, %s85, %s86
      %p90 = pneg %p84
      %p91 = scmp.eq.s32.totalorder %s28, 1
      %p92 = por %p90, %p91
      %p93 = scmp.ne.s32.totalorder %s85, %s88
      %p94 = scmp.eq.s32.totalorder %s28, 0
      %p95 = por %p93, %p94
      %p96 = scmp.ne.s32.totalorder %s85, %s88
      %p97 = scmp.eq.s32.totalorder %s33, 1
      %p98 = por %p96, %p97
      %p99 = scmp.ne.s32.totalorder %s88, %s89
      %p100 = scmp.eq.s32.totalorder %s33, 0
      %p101 = por %p99, %p100
      %p102 = scmp.ne.s32.totalorder %s88, %s89
      %p103 = scmp.eq.s32.totalorder %s34, 1
      %p104 = por %p102, %p103
      %p106 = scmp.ne.s32.totalorder %s89, %s105
      %p107 = scmp.eq.s32.totalorder %s34, 0
      %p108 = por %p106, %p107
      %s109 = ssub.s32 %s28, %s35
      %p110 = scmp.eq.s32.totalorder %s109, 0
      %s112 = sadd.s32 %s111, 1
      %s113 = scalar_select %p110, %s111, %s112
      %p116 = pneg %p110
      %p117 = scmp.eq.s32.totalorder %s28, 1
      %p118 = por %p116, %p117
      %p119 = scmp.ne.s32.totalorder %s111, %s114
      %p120 = scmp.eq.s32.totalorder %s28, 0
      %p121 = por %p119, %p120
      %p122 = scmp.ne.s32.totalorder %s111, %s114
      %p123 = scmp.eq.s32.totalorder %s33, 1
      %p124 = por %p122, %p123
      %p125 = scmp.ne.s32.totalorder %s114, %s115
      %p126 = scmp.eq.s32.totalorder %s33, 0
      %p127 = por %p125, %p126
      %p128 = scmp.ne.s32.totalorder %s114, %s115
      %p129 = scmp.eq.s32.totalorder %s34, 1
      %p130 = por %p128, %p129
      %p132 = scmp.ne.s32.totalorder %s115, %s131
      %p133 = scmp.eq.s32.totalorder %s34, 0
      %p134 = por %p132, %p133
      %s135 = ssub.s32 %s28, %s35
      %p136 = scmp.eq.s32.totalorder %s135, 0
      %s138 = sadd.s32 %s137, 1
      %s139 = scalar_select %p136, %s137, %s138
      %p142 = pneg %p136
      %p143 = scmp.eq.s32.totalorder %s28, 1
      %p144 = por %p142, %p143
      %p145 = scmp.ne.s32.totalorder %s137, %s140
      %p146 = scmp.eq.s32.totalorder %s28, 0
      %p147 = por %p145, %p146
      %p148 = scmp.ne.s32.totalorder %s137, %s140
      %p149 = scmp.eq.s32.totalorder %s33, 1
      %p150 = por %p148, %p149
      %p151 = scmp.ne.s32.totalorder %s140, %s141
      %p152 = scmp.eq.s32.totalorder %s33, 0
      %p153 = por %p151, %p152
      %p154 = scmp.ne.s32.totalorder %s140, %s141
      %p155 = scmp.eq.s32.totalorder %s34, 1
      %p156 = por %p154, %p155
      %p158 = scmp.ne.s32.totalorder %s141, %s157
      %p159 = scmp.eq.s32.totalorder %s34, 0
      %p160 = por %p158, %p159
      %s161 = ssub.s32 %s28, %s35
      %p162 = scmp.eq.s32.totalorder %s161, 0
      %s164 = sadd.s32 %s163, 1
      %s165 = scalar_select %p162, %s163, %s164
      %p168 = pneg %p162
      %p169 = scmp.eq.s32.totalorder %s28, 1
      %p170 = por %p168, %p169
      %p171 = scmp.ne.s32.totalorder %s163, %s166
      %p172 = scmp.eq.s32.totalorder %s28, 0
      %p173 = por %p171, %p172
      %p174 = scmp.ne.s32.totalorder %s163, %s166
      %p175 = scmp.eq.s32.totalorder %s33, 1
      %p176 = por %p174, %p175
      %p177 = scmp.ne.s32.totalorder %s166, %s167
      %p178 = scmp.eq.s32.totalorder %s33, 0
      %p179 = por %p177, %p178
      %p180 = scmp.ne.s32.totalorder %s166, %s167
      %p181 = scmp.eq.s32.totalorder %s34, 1
      %p182 = por %p180, %p181
      %p184 = scmp.ne.s32.totalorder %s167, %s183
      %p185 = scmp.eq.s32.totalorder %s34, 0
      %p186 = por %p184, %p185
      %s187 = ssub.s32 %s28, %s35
      %p188 = scmp.eq.s32.totalorder %s187, 0
      %s190 = sadd.s32 %s189, 1
      %s191 = scalar_select %p188, %s189, %s190
      %p194 = pneg %p188
      %p195 = scmp.eq.s32.totalorder %s28, 1
      %p196 = por %p194, %p195
      %p197 = scmp.ne.s32.totalorder %s189, %s192
      %p198 = scmp.eq.s32.totalorder %s28, 0
      %p199 = por %p197, %p198
      %p200 = scmp.ne.s32.totalorder %s189, %s192
      %p201 = scmp.eq.s32.totalorder %s33, 1
      %p202 = por %p200, %p201
      %p203 = scmp.ne.s32.totalorder %s192, %s193
      %p204 = scmp.eq.s32.totalorder %s33, 0
      %p205 = por %p203, %p204
      %p206 = scmp.ne.s32.totalorder %s192, %s193
      %p207 = scmp.eq.s32.totalorder %s34, 1
      %p208 = por %p206, %p207
      %p210 = scmp.ne.s32.totalorder %s193, %s209
      %p211 = scmp.eq.s32.totalorder %s34, 0
      %p212 = por %p210, %p211
      %s213 = ssub.s32 %s28, %s35
      %p214 = scmp.eq.s32.totalorder %s213, 0
      %s216 = sadd.s32 %s215, 1
      %s217 = scalar_select %p214, %s215, %s216
      %p220 = pneg %p214
      %p221 = scmp.eq.s32.totalorder %s28, 1
      %p222 = por %p220, %p221
      %p223 = scmp.ne.s32.totalorder %s215, %s218
      %p224 = scmp.eq.s32.totalorder %s28, 0
      %p225 = por %p223, %p224
      %p226 = scmp.ne.s32.totalorder %s215, %s218
      %p227 = scmp.eq.s32.totalorder %s33, 1
      %p228 = por %p226, %p227
      %p229 = scmp.ne.s32.totalorder %s218, %s219
      %p230 = scmp.eq.s32.totalorder %s33, 0
      %p231 = por %p229, %p230
      %p232 = scmp.ne.s32.totalorder %s218, %s219
      %p233 = scmp.eq.s32.totalorder %s34, 1
      %p234 = por %p232, %p233
      %p236 = scmp.ne.s32.totalorder %s219, %s235
      %p237 = scmp.eq.s32.totalorder %s34, 0
      %p238 = por %p236, %p237
      %s239 = ssub.s32 %s28, %s35
      %p240 = scmp.eq.s32.totalorder %s239, 0
      %s242 = sadd.s32 %s241, 1
      %s243 = scalar_select %p240, %s241, %s242
      %p246 = pneg %p240
      %p247 = scmp.eq.s32.totalorder %s28, 1
      %p248 = por %p246, %p247
      %p249 = scmp.ne.s32.totalorder %s241, %s244
      %p250 = scmp.eq.s32.totalorder %s28, 0
      %p251 = por %p249, %p250
      %p252 = scmp.ne.s32.totalorder %s241, %s244
      %p253 = scmp.eq.s32.totalorder %s33, 1
      %p254 = por %p252, %p253
      %p255 = scmp.ne.s32.totalorder %s244, %s245
      %p256 = scmp.eq.s32.totalorder %s33, 0
      %p257 = por %p255, %p256
      %p258 = scmp.ne.s32.totalorder %s244, %s245
      %p259 = scmp.eq.s32.totalorder %s34, 1
      %p260 = por %p258, %p259
      %p262 = scmp.ne.s32.totalorder %s245, %s261
      %p263 = scmp.eq.s32.totalorder %s34, 0
      %p264 = por %p262, %p263
      %p265 = scmp.le.s32.totalorder 1, %s28
      %p266 = scmp.lt.s32.totalorder %s28, 3
      %p267 = pnand %p265, %p266
      %p268 = pneg %p267
      // Predicated region
      $region9: #{tpu_custom_call.1} parent=5 // pred_check
        _
      $region10: #{tpu_custom_call.1} parent=5 // pred_check_branch
        %270 = sbr.rel (%p267) target = $region12
      $region11: #{tpu_custom_call.1} parent=5 // pred_region
        %s271 = ssub.s32 %s28, 1
        // Predicated region
        $region13: #{tpu_custom_call.1} parent=11 // pred_check
          %p272 = pneg %p49
        $region14: #{tpu_custom_call.1} parent=11 // pred_check_branch
          %274 = sbr.rel (%p272) target = $region16
        $region15: #{tpu_custom_call.1} parent=11 // pred_region
          %276 = vsyncadd [#allocation3], 0
          %s278 = sshll.u32 %s0, 4
          %s279 = int_to_ptr.hbm [resolvable:$true] %s278
          %s280 = sshll.u32 [#allocation2], 4
          %s281 = int_to_ptr.vmem [resolvable:$true] %s280
          %283 = dma.hbm_to_vmem [thread:$0]  %s279, 128, %s281, [#allocation3]
        $region16: #{tpu_custom_call.1} parent=11 // pred_fallthru
          _
      $region12: #{tpu_custom_call.1} parent=5 // pred_fallthru
        _
      %p284 = scmp.lt.s32.totalorder %s28, 2
      // Predicated region
      $region17: #{tpu_custom_call.1} parent=5 // pred_check
        %p285 = pneg %p284
      $region18: #{tpu_custom_call.1} parent=5 // pred_check_branch
        %287 = sbr.rel (%p285) target = $region20
      $region19: #{tpu_custom_call.1} parent=5 // pred_region
        // Predicated region
        $region21: #{tpu_custom_call.1} parent=19 // pred_check
          %p288 = pneg %p69
        $region22: #{tpu_custom_call.1} parent=19 // pred_check_branch
          %290 = sbr.rel (%p288) target = $region24
        $region23: #{tpu_custom_call.1} parent=19 // pred_region
          %s291 = sand.u32 %s28, 1
          %s292 = scalar_lea.sflag [#allocation6], %s291
          %s293 = sand.u32 %s59, 1
          %s294 = smul.addr %s293, 16
          %s295 = scalar_lea.vmem [#allocation5], %s294
          %297 = vsyncadd %s292, 0
          %s298 = smul.addr %s28, 8
          %s299 = scalar_lea.hbm %s1, %s298
          %s300 = sshll.u32 %s299, 4
          %s301 = int_to_ptr.hbm [resolvable:$true] %s300
          %s302 = sshll.u32 %s295, 4
          %s303 = int_to_ptr.vmem [resolvable:$true] %s302
          %308 = dma.hbm_to_vmem [thread:$0]  %s301, 256, %s303, %s292, 256, 128, 8
        $region24: #{tpu_custom_call.1} parent=19 // pred_fallthru
          _
        // Predicated region
        $region25: #{tpu_custom_call.1} parent=19 // pred_check
          %p309 = pneg %p95
        $region26: #{tpu_custom_call.1} parent=19 // pred_check_branch
          %311 = sbr.rel (%p309) target = $region28
        $region27: #{tpu_custom_call.1} parent=19 // pred_region
          %s312 = sand.u32 %s28, 1
          %s313 = scalar_lea.sflag [#allocation6], %s312
          %s314 = sand.u32 %s85, 1
          %s315 = smul.addr %s314, 16
          %s316 = scalar_lea.vmem [#allocation7], %s315
          %318 = vsyncadd %s313, 0
          %s319 = smul.addr %s28, 8
          %s320 = scalar_lea.hbm %s2, %s319
          %s321 = sshll.u32 %s320, 4
          %s322 = int_to_ptr.hbm [resolvable:$true] %s321
          %s323 = sshll.u32 %s316, 4
          %s324 = int_to_ptr.vmem [resolvable:$true] %s323
          %329 = dma.hbm_to_vmem [thread:$0]  %s322, 256, %s324, %s313, 256, 128, 8
        $region28: #{tpu_custom_call.1} parent=19 // pred_fallthru
          _
        // Predicated region
        $region29: #{tpu_custom_call.1} parent=19 // pred_check
          %p330 = pneg %p121
        $region30: #{tpu_custom_call.1} parent=19 // pred_check_branch
          %332 = sbr.rel (%p330) target = $region32
        $region31: #{tpu_custom_call.1} parent=19 // pred_region
          %s333 = sand.u32 %s28, 1
          %s334 = scalar_lea.sflag [#allocation9], %s333
          %s335 = sand.u32 %s111, 1
          %s336 = smul.addr %s335, 16
          %s337 = scalar_lea.vmem [#allocation8], %s336
          %339 = vsyncadd %s334, 0
          %s340 = smul.addr %s28, 8
          %s341 = scalar_lea.hbm %s3, %s340
          %s342 = sshll.u32 %s341, 4
          %s343 = int_to_ptr.hbm [resolvable:$true] %s342
          %s344 = sshll.u32 %s337, 4
          %s345 = int_to_ptr.vmem [resolvable:$true] %s344
          %350 = dma.hbm_to_vmem [thread:$0]  %s343, 256, %s345, %s334, 256, 128, 8
        $region32: #{tpu_custom_call.1} parent=19 // pred_fallthru
          _
        // Predicated region
        $region33: #{tpu_custom_call.1} parent=19 // pred_check
          %p351 = pneg %p147
        $region34: #{tpu_custom_call.1} parent=19 // pred_check_branch
          %353 = sbr.rel (%p351) target = $region36
        $region35: #{tpu_custom_call.1} parent=19 // pred_region
          %p354 = scmp.lt.s32.totalorder %s28, 1
          %s355 = scalar_select %p354, %s28, 1
          %s356 = scalar_lea.vmem %s4, %s355
        $region36: #{tpu_custom_call.1} parent=19 // pred_fallthru
          _
        // Predicated region
        $region37: #{tpu_custom_call.1} parent=19 // pred_check
          %p357 = pneg %p173
        $region38: #{tpu_custom_call.1} parent=19 // pred_check_branch
          %359 = sbr.rel (%p357) target = $region40
        $region39: #{tpu_custom_call.1} parent=19 // pred_region
          %s360 = sand.u32 %s28, 1
          %s361 = scalar_lea.sflag [#allocation9], %s360
          %s362 = sand.u32 %s163, 1
          %s363 = smul.addr %s362, 16
          %s364 = scalar_lea.vmem [#allocation10], %s363
          %366 = vsyncadd %s361, 0
          %s367 = smul.addr %s28, 8
          %s368 = scalar_lea.hbm %s5, %s367
          %s369 = sshll.u32 %s368, 4
          %s370 = int_to_ptr.hbm [resolvable:$true] %s369
          %s371 = sshll.u32 %s364, 4
          %s372 = int_to_ptr.vmem [resolvable:$true] %s371
          %377 = dma.hbm_to_vmem [thread:$0]  %s370, 256, %s372, %s361, 256, 128, 8
        $region40: #{tpu_custom_call.1} parent=19 // pred_fallthru
          _
      $region20: #{tpu_custom_call.1} parent=5 // pred_fallthru
        _
      %p378 = scmp.le.s32.totalorder 1, %s28
      %p379 = scmp.lt.s32.totalorder %s28, 3
      %p380 = pnand %p378, %p379
      %p381 = pneg %p380
      // Predicated region
      $region41: #{tpu_custom_call.1} parent=5 // pred_check
        _
      $region42: #{tpu_custom_call.1} parent=5 // pred_check_branch
        %383 = sbr.rel (%p380) target = $region44
      $region43: #{tpu_custom_call.1} parent=5 // pred_region
        %s384 = ssub.s32 %s28, 1
        // Predicated region
        $region45: #{tpu_custom_call.1} parent=43 // pred_check
          %p385 = pneg %p49
        $region46: #{tpu_custom_call.1} parent=43 // pred_check_branch
          %387 = sbr.rel (%p385) target = $region48
        $region47: #{tpu_custom_call.1} parent=43 // pred_region
          %389 = dma.done [#allocation3], 128
        $region48: #{tpu_custom_call.1} parent=43 // pred_fallthru
          _
        %s390 = sand.u32 %s33, 1
        %s391 = scalar_lea.sflag [#allocation6], %s390
        %s392 = sand.u32 %s62, 1
        %s393 = smul.addr %s392, 16
        %s394 = scalar_lea.vmem [#allocation5], %s393
        // Predicated region
        $region49: #{tpu_custom_call.1} parent=43 // pred_check
          %p395 = pneg %p75
        $region50: #{tpu_custom_call.1} parent=43 // pred_check_branch
          %397 = sbr.rel (%p395) target = $region52
        $region51: #{tpu_custom_call.1} parent=43 // pred_region
          %399 = dma.done %s391, 256
        $region52: #{tpu_custom_call.1} parent=43 // pred_fallthru
          _
        %s400 = sand.u32 %s33, 1
        %s401 = scalar_lea.sflag [#allocation6], %s400
        %s402 = sand.u32 %s88, 1
        %s403 = smul.addr %s402, 16
        %s404 = scalar_lea.vmem [#allocation7], %s403
        // Predicated region
        $region53: #{tpu_custom_call.1} parent=43 // pred_check
          %p405 = pneg %p101
        $region54: #{tpu_custom_call.1} parent=43 // pred_check_branch
          %407 = sbr.rel (%p405) target = $region56
        $region55: #{tpu_custom_call.1} parent=43 // pred_region
          %409 = dma.done %s401, 256
        $region56: #{tpu_custom_call.1} parent=43 // pred_fallthru
          _
        %s410 = sand.u32 %s33, 1
        %s411 = scalar_lea.sflag [#allocation9], %s410
        %s412 = sand.u32 %s114, 1
        %s413 = smul.addr %s412, 16
        %s414 = scalar_lea.vmem [#allocation8], %s413
        // Predicated region
        $region57: #{tpu_custom_call.1} parent=43 // pred_check
          %p415 = pneg %p127
        $region58: #{tpu_custom_call.1} parent=43 // pred_check_branch
          %417 = sbr.rel (%p415) target = $region60
        $region59: #{tpu_custom_call.1} parent=43 // pred_region
          %419 = dma.done %s411, 256
        $region60: #{tpu_custom_call.1} parent=43 // pred_fallthru
          _
        %s420 = sand.u32 %s33, 1
        %s421 = scalar_lea.sflag [#allocation9], %s420
        %s422 = sand.u32 %s166, 1
        %s423 = smul.addr %s422, 16
        %s424 = scalar_lea.vmem [#allocation10], %s423
        // Predicated region
        $region61: #{tpu_custom_call.1} parent=43 // pred_check
          %p425 = pneg %p179
        $region62: #{tpu_custom_call.1} parent=43 // pred_check_branch
          %427 = sbr.rel (%p425) target = $region64
        $region63: #{tpu_custom_call.1} parent=43 // pred_region
          %429 = dma.done %s421, 256
        $region64: #{tpu_custom_call.1} parent=43 // pred_fallthru
          _
        %p430 = pneg %p49
        %p431 = pneg %p46
        %s432 = sand.u32 %s33, 1
        %s433 = scalar_lea.sflag [#allocation6], %s432
        %s434 = sand.u32 %s62, 1
        %s435 = smul.addr %s434, 16
        %s436 = scalar_lea.vmem [#allocation5], %s435
        %p437 = pneg %p75
        %p438 = pneg %p72
        %s439 = sand.u32 %s33, 1
        %s440 = scalar_lea.sflag [#allocation6], %s439
        %s441 = sand.u32 %s88, 1
        %s442 = smul.addr %s441, 16
        %s443 = scalar_lea.vmem [#allocation7], %s442
        %p444 = pneg %p101
        %p445 = pneg %p98
        %s446 = sand.u32 %s33, 1
        %s447 = scalar_lea.sflag [#allocation9], %s446
        %s448 = sand.u32 %s114, 1
        %s449 = smul.addr %s448, 16
        %s450 = scalar_lea.vmem [#allocation8], %s449
        %p451 = pneg %p127
        %p452 = pneg %p124
        %p453 = scmp.lt.s32.totalorder %s33, 1
        %s454 = scalar_select %p453, %s33, 1
        %s455 = scalar_lea.vmem %s4, %s454
        %p456 = pneg %p153
        %p457 = pneg %p150
        %s458 = sand.u32 %s33, 1
        %s459 = scalar_lea.sflag [#allocation9], %s458
        %s460 = sand.u32 %s166, 1
        %s461 = smul.addr %s460, 16
        %s462 = scalar_lea.vmem [#allocation10], %s461
        %p463 = pneg %p179
        %p464 = pneg %p176
        %p465 = pneg %p205
        %p466 = pneg %p202
        %s467 = sand.u32 %s192, 1
        %s468 = scalar_lea.sflag [#allocation4], %s467
        %s469 = sand.u32 %s192, 1
        %s470 = smul.addr %s469, 16
        %s471 = scalar_lea.vmem [#allocation11], %s470
        %p472 = pneg %p231
        %p473 = pneg %p228
        %s474 = sand.u32 %s33, 1
        %s475 = scalar_lea.sflag [#allocation13], %s474
        %s476 = sand.u32 %s218, 1
        %s477 = smul.addr %s476, 8
        %s478 = scalar_lea.vmem [#allocation12], %s477
        %p479 = pneg %p257
        %p480 = pneg %p254
        %s481 = sand.u32 %s33, 1
        %s482 = scalar_lea.sflag [#allocation13], %s481
        %s483 = sand.u32 %s244, 1
        %s484 = smul.addr %s483, 8
        %s485 = scalar_lea.vmem [#allocation14], %s484
        %p486 = scmp.lt.s32.totalorder %s33, 1
        %s487 = scalar_select %p486, %s33, 1
        %s488 = scalar_lea.vmem %s4, %s487
        %v489 = vld [vmem:[%s394] sm:$0xff]
        %v490 = vld [vmem:[%s394 + $0x8] sm:$0xff]
        %v491 = vld [vmem:[%s404] sm:$0xff]
        %v492 = vld [vmem:[%s404 + $0x8] sm:$0xff]
        %v493 = vld [vmem:[%s414] sm:$0xff]
        %v494 = vld [vmem:[%s414 + $0x8] sm:$0xff]
        %v495 = vsub.f32 0.0, %v489
        %v496 = vsub.f32 0.0, %v490
        %v497 = vmul.f32 %v495, 1.442695
        %v498 = vpow.pop %v497
        %v499 = vmul.f32 %v496, 1.442695
        %v500 = vpow.pop %v499
        %v501 = vadd.f32 %v498, 1.0
        %v502 = vadd.f32 %v500, 1.0
        %v503 = vrcp.pop %v501
        %v504 = vmul.f32 %v501, %v503
        %v505 = vsub.f32 1.0, %v504
        %v506 = vmul.f32 %v503, %v505
        %v507 = vadd.f32 %v503, %v506
        %vm508 = vweird.f32 %v501
        %vm509 = vweird.f32 %v503
        %vm510 = vmor %vm508, %vm509
        %v511 = vsel %vm510, %v503, %v507
        %v512 = vand.u32 2147483647, %v501
        %vm513 = vcmp.eq.f32.partialorder %v512, 8.507059e+37
        %v514 = vand.u32 %v501, 2147483648
        %v515 = vor.u32 1.1754944e-38, %v514
        %v516 = vsel %vm513, %v515, %v511
        %v517 = vmul.f32 1.0, %v516
        %v518 = vrcp.pop %v502
        %v519 = vmul.f32 %v502, %v518
        %v520 = vsub.f32 1.0, %v519
        %v521 = vmul.f32 %v518, %v520
        %v522 = vadd.f32 %v518, %v521
        %vm523 = vweird.f32 %v502
        %vm524 = vweird.f32 %v518
        %vm525 = vmor %vm523, %vm524
        %v526 = vsel %vm525, %v518, %v522
        %v527 = vand.u32 2147483647, %v502
        %vm528 = vcmp.eq.f32.partialorder %v527, 8.507059e+37
        %v529 = vand.u32 %v502, 2147483648
        %v530 = vor.u32 1.1754944e-38, %v529
        %v531 = vsel %vm528, %v530, %v526
        %v532 = vmul.f32 1.0, %v531
        %v533 = vmul.f32 %v493, 1.442695
        %v534 = vpow.pop %v533
        %v535 = vmul.f32 %v494, 1.442695
        %v536 = vpow.pop %v535
        %v537 = vmul.f32 %v491, %v517
        %v538 = vmul.f32 %v492, %v532
        %v539 = vsub.f32 1.0, %v517
        %v540 = vsub.f32 1.0, %v532
        %v541 = vmul.f32 %v517, %v539
        %v542 = vmul.f32 %v532, %v540
        %v543 = vmul.f32 %v491, %v491
        %v544 = vmul.f32 %v492, %v492
        %v545 = vmul.f32 %v541, %v543
        %v546 = vmul.f32 %v542, %v544
        %v547 = vmul.f32 %v517, %v534
        %v548 = vmul.f32 %v532, %v536
        %v549 = vadd.f32 %v545, %v547
        %v550 = vadd.f32 %v546, %v548
        %v551 = vmax.f32 %v549, 0.0
        %v552 = vmax.f32 %v550, 0.0
        %v553 = vld [vmem:[%s424] sm:$0xff]
        %v554 = vld [vmem:[%s424 + $0x8] sm:$0xff]
        %v555 = vrsqrt.pop %v551
        %v556 = vmul.f32 %v555, %v551
        %v557 = vmul.f32 %v556, %v555
        %v558 = vmul.f32 0.5, %v557
        %v559 = vsub.f32 1.5, %v558
        %v560 = vmul.f32 %v555, %v559
        %v561 = vmul.f32 %v551, %v560
        %vm562 = vcmp.eq.f32.partialorder %v551, inf
        %v563 = vsel %vm562, %v551, %v561
        %vm564 = vcmp.eq.f32.partialorder %v551, 0.0
        %v565 = vand.u32 %v551, 2147483648
        %v566 = vsel %vm564, %v565, %v563
        %v567 = vrsqrt.pop %v552
        %v568 = vmul.f32 %v567, %v552
        %v569 = vmul.f32 %v568, %v567
        %v570 = vmul.f32 0.5, %v569
        %v571 = vsub.f32 1.5, %v570
        %v572 = vmul.f32 %v567, %v571
        %v573 = vmul.f32 %v552, %v572
        %vm574 = vcmp.eq.f32.partialorder %v552, inf
        %v575 = vsel %vm574, %v552, %v573
        %vm576 = vcmp.eq.f32.partialorder %v552, 0.0
        %v577 = vand.u32 %v552, 2147483648
        %v578 = vsel %vm576, %v577, %v575
        %v579 = vmul.f32 %v553, %v566
        %v580 = vmul.f32 %v554, %v578
        %v581 = vadd.f32 %v537, %v579
        %v582 = vadd.f32 %v538, %v580
        %v583 = vld [vmem:[%s488] sm:$0x1]
        %v585 = vperm.slane %v583, 0
        %v587 = vsub.f32 %v581, %v585
        %v588 = vsub.f32 %v582, %v585
        %589 = vst [vmem:[%s471] sm:$0xff] %v587
        %590 = vst [vmem:[%s471 + $0x8] sm:$0xff] %v588
        %v591 = vmax.f32 %v587, -10.0
        %v592 = vmax.f32 %v588, -10.0
        %v593 = vmin.f32 %v591, 10.0
        %v594 = vmin.f32 %v592, 10.0
        %v595 = vmul.f32 %v593, 1.442695
        %v596 = vpow.pop %v595
        %v597 = vmul.f32 %v594, 1.442695
        %v598 = vpow.pop %v597
        %v599 = vmax.f32 %v489, 0.0
        %v600 = vmax.f32 %v490, 0.0
        %v601 = vmax.f32 %v517, %v539
        %v602 = vmax.f32 %v532, %v540
        %v603 = vlog2.pop %v601
        %v604 = vmul.f32 %v603, 0.6931472
        %v605 = vlog2.pop %v602
        %v606 = vmul.f32 %v605, 0.6931472
        %v607 = vsub.f32 %v599, %v604
        %v608 = vsub.f32 %v600, %v606
        %v609 = vadd.f32 %v543, %v534
        %v610 = vadd.f32 %v544, %v536
        %v611 = vadd.f32 %v493, 1.0
        %v612 = vadd.f32 %v494, 1.0
        %v613 = vsub.f32 %v611, %v609
        %v614 = vsub.f32 %v612, %v610
        %v615 = vmul.f32 %v613, -0.5
        %v616 = vmul.f32 %v614, -0.5
        %v617 = vsub.f32 %v489, -2.1972246
        %v618 = vsub.f32 %v490, -2.1972246
        %v619 = vadd.f32 %v617, %v615
        %v620 = vadd.f32 %v618, %v616
        %v621 = vmul.f32 %v517, %v619
        %v622 = vmul.f32 %v532, %v620
        %v623 = vsub.f32 %v621, %v607
        %v624 = vsub.f32 %v622, %v608
        %p625 = scmp.eq.s32.totalorder %s33, 1
        %p626 = scmp.ne.s32.totalorder %s33, 1
        // Predicated region
        $region65: #{tpu_custom_call.1} parent=43 // pred_check
          %p627 = pneg %p626
        $region66: #{tpu_custom_call.1} parent=43 // pred_check_branch
          %629 = sbr.rel (%p627) target = $region68
        $region67: #{tpu_custom_call.1} parent=43 // pred_region
          %v630 = vadd.f32 %v623, %v624
          %631 = vadd.xlane.f32.xlu0 %v630
          %v632 = vpop.xlane.xlu0 %631
          %v633 = vrot.slane %v632, 4
          %v634 = vadd.f32 %v632, %v633
          %v635 = vrot.slane %v634, 2
          %v636 = vadd.f32 %v634, %v635
          %v637 = vrot.slane %v636, 1
          %v638 = vadd.f32 %v636, %v637
          %s639 = vtos %v638
          %v640 = vstv %s639
          %641 = vst [vmem:[%s478] sm:$0xff] %v640
        $region68: #{tpu_custom_call.1} parent=43 // pred_fallthru
          _
        // Predicated region
        $region69: #{tpu_custom_call.1} parent=43 // pred_check
          %p642 = pneg %p625
        $region70: #{tpu_custom_call.1} parent=43 // pred_check_branch
          %644 = sbr.rel (%p642) target = $region72
        $region71: #{tpu_custom_call.1} parent=43 // pred_region
          %s645 = smul.u32 %s33, 128
          %v646 = vlaneseq
          %v647 = vand.u32 %v646, 127
          %v648 = vstv %s645
          %v649 = vadd.s32 %v648, %v647
          %vm650 = vcmp.lt.s32.totalorder %v649, 200
          %v651 = vsel %vm650, %v623, 0.0
          %v652 = vsel %vm650, %v624, 0.0
          %v653 = vadd.f32 %v651, %v652
          %654 = vadd.xlane.f32.xlu0 %v653
          %v655 = vpop.xlane.xlu0 %654
          %v656 = vrot.slane %v655, 4
          %v657 = vadd.f32 %v655, %v656
          %v658 = vrot.slane %v657, 2
          %v659 = vadd.f32 %v657, %v658
          %v660 = vrot.slane %v659, 1
          %v661 = vadd.f32 %v659, %v660
          %s662 = vtos %v661
          %v663 = vstv %s662
          %664 = vst [vmem:[%s478] sm:$0xff] %v663
        $region72: #{tpu_custom_call.1} parent=43 // pred_fallthru
          _
        %v665 = vld [vmem:[#allocation2] sm:$0xff]
        %vm666 = vcmask 130048
        %v668 = vsel %vm666, %v665, 0
        %670 = vmatpush.msra.mxu0 0.0
        %671 = vmatpush.msra.mxu0 0.0
        %672 = vmatpush.msra.mxu0 0.0
        %673 = vmatpush.msra.mxu0 0.0
        %674 = vmatpush.msra.mxu0 0.0
        %675 = vmatpush.msra.mxu0 0.0
        %676 = vmatpush.msra.mxu0 0.0
        %677 = vmatpush.msra.mxu0 0.0
        %678 = vmatpush.msra.mxu0 0.0
        %679 = vmatpush.msra.mxu0 0.0
        %680 = vmatpush.msra.mxu0 0.0
        %681 = vmatpush.msra.mxu0 0.0
        %682 = vmatpush.msra.mxu0 0.0
        %683 = vmatpush.msra.mxu0 0.0
        %684 = vmatpush.msra.mxu0 %v598
        %685 = vmatpush.msra.mxu0 %v596
        %686 = vmatmul.f32.gmra.mxu0 %v668
        %v687 = vpop.f32.mrf.mxu0
        %v688 = vadd.f32 0.0, %v687
        %689 = vdwg.mxu0
        %690 = vst [vmem:[%s485] sm:$0xff] %v688
        %s691 = sand.u32 %s192, 1
        %s692 = scalar_lea.sflag [#allocation4], %s691
        %s693 = sand.u32 %s192, 1
        %s694 = smul.addr %s693, 16
        %s695 = scalar_lea.vmem [#allocation11], %s694
        %s696 = sand.u32 %s33, 1
        %s697 = scalar_lea.sflag [#allocation13], %s696
        %s698 = sand.u32 %s218, 1
        %s699 = smul.addr %s698, 8
        %s700 = scalar_lea.vmem [#allocation12], %s699
        %s701 = sand.u32 %s33, 1
        %s702 = scalar_lea.sflag [#allocation13], %s701
        %s703 = sand.u32 %s244, 1
        %s704 = smul.addr %s703, 8
        %s705 = scalar_lea.vmem [#allocation14], %s704
        // Predicated region
        $region73: #{tpu_custom_call.1} parent=43 // pred_check
          %p706 = pneg %p202
        $region74: #{tpu_custom_call.1} parent=43 // pred_check_branch
          %708 = sbr.rel (%p706) target = $region76
        $region75: #{tpu_custom_call.1} parent=43 // pred_region
          %710 = vsyncadd %s692, 0
          %s711 = smul.addr %s33, 8
          %s712 = scalar_lea.hbm %s6, %s711
          %s713 = sshll.u32 %s695, 4
          %s714 = int_to_ptr.vmem [resolvable:$true] %s713
          %s715 = sshll.u32 %s712, 4
          %s716 = int_to_ptr.hbm [resolvable:$true] %s715
          %721 = dma.vmem_to_hbm [thread:$0]  %s714, 256, %s716, %s692, 128, 256, 8
        $region76: #{tpu_custom_call.1} parent=43 // pred_fallthru
          _
        // Predicated region
        $region77: #{tpu_custom_call.1} parent=43 // pred_check
          %p722 = pneg %p228
        $region78: #{tpu_custom_call.1} parent=43 // pred_check_branch
          %724 = sbr.rel (%p722) target = $region80
        $region79: #{tpu_custom_call.1} parent=43 // pred_region
          %726 = vsyncadd %s697, 0
          %s727 = smul.addr %s33, 8
          %s728 = scalar_lea.hbm %s7, %s727
          %s730 = sshll.u32 %s700, 4
          %s731 = int_to_ptr.vmem [resolvable:$true] %s730
          %s732 = sshll.u32 %s728, 4
          %s733 = int_to_ptr.hbm [resolvable:$true] %s732
          %735 = dma.vmem_to_hbm [thread:$0]  %s731, 128, %s733, %s697
        $region80: #{tpu_custom_call.1} parent=43 // pred_fallthru
          _
        // Predicated region
        $region81: #{tpu_custom_call.1} parent=43 // pred_check
          %p736 = pneg %p254
        $region82: #{tpu_custom_call.1} parent=43 // pred_check_branch
          %738 = sbr.rel (%p736) target = $region84
        $region83: #{tpu_custom_call.1} parent=43 // pred_region
          %740 = vsyncadd %s702, 0
          %s741 = smul.addr %s33, 8
          %s742 = scalar_lea.hbm %s8, %s741
          %s744 = sshll.u32 %s705, 4
          %s745 = int_to_ptr.vmem [resolvable:$true] %s744
          %s746 = sshll.u32 %s742, 4
          %s747 = int_to_ptr.hbm [resolvable:$true] %s746
          %749 = dma.vmem_to_hbm [thread:$0]  %s745, 128, %s747, %s702
        $region84: #{tpu_custom_call.1} parent=43 // pred_fallthru
          _
      $region44: #{tpu_custom_call.1} parent=5 // pred_fallthru
        _
      %p750 = scmp.le.s32.totalorder 2, %s28
      // Predicated region
      $region85: #{tpu_custom_call.1} parent=5 // pred_check
        %p751 = pneg %p750
      $region86: #{tpu_custom_call.1} parent=5 // pred_check_branch
        %753 = sbr.rel (%p751) target = $region88
      $region87: #{tpu_custom_call.1} parent=5 // pred_region
        %s754 = ssub.s32 %s28, 2
        // Predicated region
        $region89: #{tpu_custom_call.1} parent=87 // pred_check
          %p755 = pneg %p208
        $region90: #{tpu_custom_call.1} parent=87 // pred_check_branch
          %757 = sbr.rel (%p755) target = $region92
        $region91: #{tpu_custom_call.1} parent=87 // pred_region
          %s758 = sand.u32 %s193, 1
          %s759 = scalar_lea.sflag [#allocation4], %s758
          %s760 = sand.u32 %s193, 1
          %s761 = smul.addr %s760, 16
          %s762 = scalar_lea.vmem [#allocation11], %s761
          %764 = dma.done %s759, 256
        $region92: #{tpu_custom_call.1} parent=87 // pred_fallthru
          _
        // Predicated region
        $region93: #{tpu_custom_call.1} parent=87 // pred_check
          %p765 = pneg %p234
        $region94: #{tpu_custom_call.1} parent=87 // pred_check_branch
          %767 = sbr.rel (%p765) target = $region96
        $region95: #{tpu_custom_call.1} parent=87 // pred_region
          %s768 = sand.u32 %s34, 1
          %s769 = scalar_lea.sflag [#allocation13], %s768
          %s770 = sand.u32 %s219, 1
          %s771 = smul.addr %s770, 8
          %s772 = scalar_lea.vmem [#allocation12], %s771
          %774 = dma.done %s769, 128
        $region96: #{tpu_custom_call.1} parent=87 // pred_fallthru
          _
        // Predicated region
        $region97: #{tpu_custom_call.1} parent=87 // pred_check
          %p775 = pneg %p260
        $region98: #{tpu_custom_call.1} parent=87 // pred_check_branch
          %777 = sbr.rel (%p775) target = $region100
        $region99: #{tpu_custom_call.1} parent=87 // pred_region
          %s778 = sand.u32 %s34, 1
          %s779 = scalar_lea.sflag [#allocation13], %s778
          %s780 = sand.u32 %s245, 1
          %s781 = smul.addr %s780, 8
          %s782 = scalar_lea.vmem [#allocation14], %s781
          %784 = dma.done %s779, 128
        $region100: #{tpu_custom_call.1} parent=87 // pred_fallthru
          _
      $region88: #{tpu_custom_call.1} parent=5 // pred_fallthru
        _
    $region6: #{tpu_custom_call.1} parent=1 // loop_footer
      %s32 = sadd.s32 1, %s28
    $region7: #{tpu_custom_call.1} parent=1 // loop_footer_branch
      %27 = sbr.rel target = $region3
    $region8: #{tpu_custom_call.1} parent=1 // loop_exit
      _
    %785 = vsyncpa [#allocation3], 1
    %s786 = scalar_lea.sflag [#allocation3], 1
    %787 = vsyncpa %s786, 1
    %788 = vsyncpa [#allocation6], 1
    %s789 = scalar_lea.sflag [#allocation6], 1
    %790 = vsyncpa %s789, 1
    %791 = vsyncpa [#allocation9], 1
    %s792 = scalar_lea.sflag [#allocation9], 1
    %793 = vsyncpa %s792, 1
    %794 = vsyncpa [#allocation4], 1
    %s795 = scalar_lea.sflag [#allocation4], 1
    %796 = vsyncpa %s795, 1
    %797 = vsyncpa [#allocation13], 1
    %s798 = scalar_lea.sflag [#allocation13], 1
    %799 = vsyncpa %s798, 1

</llo_original>
